<compile_context>
chip_gen: v7x
topology: tpu7x:2x2x1
jax: 0.10.0
libtpu: 0.0.40
codegen_flags: <defaults>
</compile_context>

<pallas_src>
import jax
import jax.numpy as jnp
from jax.experimental import pallas as pl
from jax.experimental.pallas import tpu as pltpu


_LANE = 128
_SUBLANE = 16          # bf16 packs 16 rows per vreg; keep row tiles 16-aligned
_NEG_SLOPE = 0.01      # torch.nn.functional.leaky_relu default


def _leaky_relu(x, negative_slope=_NEG_SLOPE):
    return jnp.where(x > 0, x, negative_slope * x)


def _round_up(n, m):
    return ((n + m - 1) // m) * m


# --------------------------------------------------------------------------
# Kernel: one batch tile per grid step; weights/biases are VMEM-resident.
# --------------------------------------------------------------------------
def ctm_net_kernel(x_ref, w1_ref, b1_ref, w2_ref, b2_ref, w3_ref, b3_ref, o_ref):
    x = x_ref[...]

    # linear1 + leaky_relu (f32 accumulate, f32 epilogue)
    h1 = jnp.dot(x, w1_ref[...], preferred_element_type=jnp.float32) + b1_ref[...]
    h1 = _leaky_relu(h1).astype(w2_ref.dtype)

    # linear2 + leaky_relu
    h2 = jnp.dot(h1, w2_ref[...], preferred_element_type=jnp.float32) + b2_ref[...]
    h2 = _leaky_relu(h2).astype(w3_ref.dtype)

    # linear3 (no activation)
    out = jnp.dot(h2, w3_ref[...], preferred_element_type=jnp.float32) + b3_ref[...]
    o_ref[...] = out.astype(o_ref.dtype)


# --------------------------------------------------------------------------
# One-time parameter preparation (hoisted out of the per-call path).
# --------------------------------------------------------------------------
def prepare_params(params, *, compute_dtype=jnp.bfloat16):
    """Pad the output-feature dims of each layer to 128 lanes and cast the
    weights to the MXU compute dtype.  The layer-1 contraction dim (input_size)
    is intentionally NOT padded in HBM.  Biases stay f32 (added to the f32
    accumulator).  Call once; reuse the result across forward calls."""
    w1, b1 = params["w1"], params["b1"]
    w2, b2 = params["w2"], params["b2"]
    w3, b3 = params["w3"], params["b3"]

    in_dim, h1_dim = w1.shape
    h2_dim = w2.shape[1]
    out_dim = w3.shape[1]
    assert w2.shape[0] == h1_dim and w3.shape[0] == h2_dim

    H1p = _round_up(h1_dim, _LANE)
    H2p = _round_up(h2_dim, _LANE)
    Op = _round_up(out_dim, _LANE)

    def pad2(a, rows, cols):
        return jnp.pad(a, ((0, rows - a.shape[0]), (0, cols - a.shape[1])))

    return {
        "w1": pad2(w1, in_dim, H1p).astype(compute_dtype),
        "w2": pad2(w2, H1p, H2p).astype(compute_dtype),
        "w3": pad2(w3, H2p, Op).astype(compute_dtype),
        # Padded bias columns are zero -> padded lanes stay exactly zero
        # (leaky_relu(0) == 0), so the final slice recovers the exact result.
        "b1": pad2(b1.reshape(1, -1), 1, H1p).astype(jnp.float32),
        "b2": pad2(b2.reshape(1, -1), 1, H2p).astype(jnp.float32),
        "b3": pad2(b3.reshape(1, -1), 1, Op).astype(jnp.float32),
        "dims": (in_dim, h1_dim, h2_dim, out_dim),
        "compute_dtype": compute_dtype,
    }


# --------------------------------------------------------------------------
# Forward wrapper.
# --------------------------------------------------------------------------
def ctm_net_forward(x, prepped, *, batch_tile=512, out_dtype=jnp.float32):
    """Fused CTM_Net forward.  x: (B, input_size); prepped: prepare_params(...).

    Note: for tiny problems (a few hundred K FLOPs total) the fixed
    pallas_call + DMA latency dominates and calling ctm_net_reference directly
    can be faster; this wrapper always uses the Pallas kernel.
    """
    compute_dtype = prepped["compute_dtype"]
    in_dim, _h1, _h2, out_dim = prepped["dims"]
    w1, b1 = prepped["w1"], prepped["b1"]
    w2, b2 = prepped["w2"], prepped["b2"]
    w3, b3 = prepped["w3"], prepped["b3"]
    H1p, H2p, Op = w1.shape[1], w2.shape[1], w3.shape[1]

    B = x.shape[0]
    assert x.shape[1] == in_dim

    # Pad the batch only to the 16-row sublane-packing granularity.
    Bp = _round_up(B, _SUBLANE)
    xp = x if Bp == B else jnp.pad(x, ((0, Bp - B), (0, 0)))
    xp = xp.astype(compute_dtype)

    # ---- VMEM accounting (counts f32 intermediates + double-buffered tiles) --
    c_item = jnp.dtype(compute_dtype).itemsize
    Kv = _round_up(in_dim, _LANE)          # in-VMEM lane padding of x / w1 rows
    weight_bytes = (Kv * H1p + H1p * H2p + H2p * Op) * c_item
    bias_bytes = (H1p + H2p + Op) * 4

    def vmem_need(tb, weight_bufs):
        return (2 * tb * Kv * c_item               # x tile, double-buffered
                + 2 * tb * Op * c_item             # out tile, double-buffered
                + weight_bufs * (weight_bytes + bias_bytes)
                + tb * (H1p + H2p) * 4             # f32 h1 / h2 intermediates
                + tb * Op * 4)                     # f32 layer-3 accumulator

    try:
        vmem_cap = int(pltpu.get_tpu_info().vmem_capacity_bytes)
    except Exception:
        vmem_cap = 64 << 20                        # v7x per-TensorCore (worst case)
    vmem_budget = int(vmem_cap * 0.75)

    # ---- Batch-tile selection: largest 16-multiple divisor of Bp that fits ----
    def pick_tile(cap_rows):
        cap = max(_SUBLANE, min(cap_rows, Bp))
        best, best_multi = _SUBLANE, None
        for t in range(_SUBLANE, cap + 1, _SUBLANE):
            if Bp % t == 0:
                best = t
                if Bp // t >= 2:                   # keep >= 2 grid steps (v7x)
                    best_multi = t
        return best_multi if best_multi is not None else best

    TB = pick_tile(batch_tile)
    while TB > _SUBLANE and vmem_need(TB, 2) > vmem_budget:
        TB = pick_tile(TB - _SUBLANE)

    vmem_limit = max(int(1.25 * vmem_need(TB, 2)), 8 << 20)
    vmem_limit = int(min(vmem_limit, int(0.9 * vmem_cap)))

    grid = (Bp // TB,)
    vmem_space = pltpu.MemorySpace.VMEM

    x_spec = pl.BlockSpec((TB, in_dim), lambda i: (i, 0), memory_space=vmem_space)
    out_spec = pl.BlockSpec((TB, Op), lambda i: (i, 0), memory_space=vmem_space)

    def weight_specs(pipeline_mode):
        def resident(shape):
            kwargs = dict(memory_space=vmem_space)
            if pipeline_mode is not None:
                kwargs["pipeline_mode"] = pipeline_mode
            # Constant block index -> stays resident in VMEM across grid steps.
            return pl.BlockSpec(shape, lambda i: (0, 0), **kwargs)
        return [resident(w1.shape), resident(b1.shape),
                resident(w2.shape), resident(b2.shape),
                resident(w3.shape), resident(b3.shape)]

    flops = 2 * Bp * (in_dim * H1p + H1p * H2p + H2p * Op)
    bytes_accessed = int(Bp * in_dim * c_item + weight_bytes + bias_bytes
                         + Bp * Op * c_item)
    cost = pl.CostEstimate(flops=flops, transcendentals=0,
                           bytes_accessed=bytes_accessed)

    def run(pipeline_mode):
        return pl.pallas_call(
            ctm_net_kernel,
            out_shape=jax.ShapeDtypeStruct((Bp, Op), compute_dtype),
            grid=grid,
            in_specs=[x_spec] + weight_specs(pipeline_mode),
            out_specs=out_spec,
            compiler_params=pltpu.CompilerParams(
                dimension_semantics=("parallel",),
                vmem_limit_bytes=vmem_limit,
            ),
            cost_estimate=cost,
        )(xp, w1, b1, w2, b2, w3, b3)

    try:
        # Single-buffer the resident weights (constant index_map) so the
        # pipeliner doesn't allocate a second, never-refilled copy.
        out_padded = run(pl.Buffered(1))
    except Exception:
        # Fallback for JAX versions without pipeline_mode support.
        out_padded = run(None)

    out = out_padded[:B, :out_dim]
    if out_dtype is not None:
        out = out.astype(out_dtype)
    return out


# --------------------------------------------------------------------------
# Init + pure-JAX reference (matches the PyTorch module semantics).
# --------------------------------------------------------------------------
def init_params(key, input_size, hidden1_size, hidden2_size, output):
    """nn.Linear-style uniform(-1/sqrt(fan_in), 1/sqrt(fan_in)) init.
    Weights stored transposed: (in_features, out_features)."""
    ks = jax.random.split(key, 6)

    def lin(kw, kb, fan_in, fan_out):
        bound = 1.0 / jnp.sqrt(fan_in)
        w = jax.random.uniform(kw, (fan_in, fan_out), jnp.float32, -bound, bound)
        b = jax.random.uniform(kb, (1, fan_out), jnp.float32, -bound, bound)
        return w, b

    w1, b1 = lin(ks[0], ks[1], input_size, hidden1_size)
    w2, b2 = lin(ks[2], ks[3], hidden1_size, hidden2_size)
    w3, b3 = lin(ks[4], ks[5], hidden2_size, output)
    return {"w1": w1, "b1": b1, "w2": w2, "b2": b2, "w3": w3, "b3": b3}


def ctm_net_reference(x, params):
    h1 = _leaky_relu(x @ params["w1"] + params["b1"])
    h2 = _leaky_relu(h1 @ params["w2"] + params["b2"])
    return h2 @ params["w3"] + params["b3"]


if __name__ == "__main__":
    key = jax.random.PRNGKey(0)
    k_x, k_p = jax.random.split(key)

    batch, input_size, hidden1, hidden2, output = 8, 32, 64, 48, 16

    x = jax.random.normal(k_x, (batch, input_size), jnp.float32)
    params = init_params(k_p, input_size, hidden1, hidden2, output)

    prepped = prepare_params(params, compute_dtype=jnp.bfloat16)  # one-time prep
    out = ctm_net_forward(x, prepped)
    out = jax.block_until_ready(out)

    ref = ctm_net_reference(x, params)
    assert out.shape == (batch, output)
    # bf16 operands + bf16 output store, f32 accumulation, vs f32 reference.
    assert jnp.allclose(out, ref, atol=3e-2, rtol=3e-2), float(
        jnp.max(jnp.abs(out - ref)))

    print("KERNEL_OK")
</pallas_src>

<mosaic_0001>
module attributes {stable_mosaic.version = 11 : i64} {
  func.func @ctm_net_kernel(%arg0: i32, %arg1: memref<16x32xbf16, #tpu.memory_space<vmem>>, %arg2: memref<32x128xbf16, #tpu.memory_space<vmem>>, %arg3: memref<1x128xf32, #tpu.memory_space<vmem>>, %arg4: memref<128x128xbf16, #tpu.memory_space<vmem>>, %arg5: memref<1x128xf32, #tpu.memory_space<vmem>>, %arg6: memref<128x128xbf16, #tpu.memory_space<vmem>>, %arg7: memref<1x128xf32, #tpu.memory_space<vmem>>, %arg8: memref<16x128xbf16, #tpu.memory_space<vmem>>) attributes {dimension_semantics = [#tpu.dimension_semantics<parallel>], iteration_bounds = array<i64: 1>, scalar_prefetch = 0 : i64, scratch_operands = 0 : i64, tpu.core_type = #tpu.core_type<tc>, window_params = [{transform_indices = @transform_0, window_bounds = array<i64: 16, 32>}, {pipeline_mode = #tpu.pipeline_mode<synchronous>, transform_indices = @transform_1, window_bounds = array<i64: 32, 128>}, {pipeline_mode = #tpu.pipeline_mode<synchronous>, transform_indices = @transform_2, window_bounds = array<i64: 1, 128>}, {pipeline_mode = #tpu.pipeline_mode<synchronous>, transform_indices = @transform_3, window_bounds = array<i64: 128, 128>}, {pipeline_mode = #tpu.pipeline_mode<synchronous>, transform_indices = @transform_4, window_bounds = array<i64: 1, 128>}, {pipeline_mode = #tpu.pipeline_mode<synchronous>, transform_indices = @transform_5, window_bounds = array<i64: 128, 128>}, {pipeline_mode = #tpu.pipeline_mode<synchronous>, transform_indices = @transform_6, window_bounds = array<i64: 1, 128>}, {transform_indices = @transform_7, window_bounds = array<i64: 16, 128>}]} {
    %c0 = arith.constant 0 : index
    %c0_0 = arith.constant 0 : index
    %0 = vector.load %arg1[%c0, %c0_0] : memref<16x32xbf16, #tpu.memory_space<vmem>>, vector<16x32xbf16>
    %c0_1 = arith.constant 0 : index
    %c0_2 = arith.constant 0 : index
    %1 = vector.load %arg2[%c0_1, %c0_2] : memref<32x128xbf16, #tpu.memory_space<vmem>>, vector<32x128xbf16>
    %cst = arith.constant dense<0.000000e+00> : vector<16x128xf32>
    %2 = tpu.matmul %0, %1, %cst {dimension_numbers = #tpu.dot_dimension_numbers<[1], [0], [0], [1], [0, 0, 1, 1], [], []>} : vector<16x32xbf16>, vector<32x128xbf16>, vector<16x128xf32> -> vector<16x128xf32>
    %c0_3 = arith.constant 0 : index
    %c0_4 = arith.constant 0 : index
    %3 = vector.load %arg3[%c0_3, %c0_4] : memref<1x128xf32, #tpu.memory_space<vmem>>, vector<1x128xf32>
    %4 = vector.broadcast %3 : vector<1x128xf32> to vector<16x128xf32>
    %5 = arith.addf %2, %4 : vector<16x128xf32>
    %cst_5 = arith.constant 0.000000e+00 : f32
    %6 = vector.broadcast %cst_5 : f32 to vector<16x128xf32>
    %7 = arith.cmpf ogt, %5, %6 : vector<16x128xf32>
    %cst_6 = arith.constant 0.00999999977 : f32
    %8 = vector.broadcast %cst_6 : f32 to vector<16x128xf32>
    %9 = arith.mulf %8, %5 : vector<16x128xf32>
    %10 = arith.select %7, %5, %9 : vector<16x128xi1>, vector<16x128xf32>
    %11 = arith.truncf %10 : vector<16x128xf32> to vector<16x128xbf16>
    %c0_7 = arith.constant 0 : index
    %c0_8 = arith.constant 0 : index
    %12 = vector.load %arg4[%c0_7, %c0_8] : memref<128x128xbf16, #tpu.memory_space<vmem>>, vector<128x128xbf16>
    %cst_9 = arith.constant dense<0.000000e+00> : vector<16x128xf32>
    %13 = tpu.matmul %11, %12, %cst_9 {dimension_numbers = #tpu.dot_dimension_numbers<[1], [0], [0], [1], [0, 0, 1, 1], [], []>} : vector<16x128xbf16>, vector<128x128xbf16>, vector<16x128xf32> -> vector<16x128xf32>
    %c0_10 = arith.constant 0 : index
    %c0_11 = arith.constant 0 : index
    %14 = vector.load %arg5[%c0_10, %c0_11] : memref<1x128xf32, #tpu.memory_space<vmem>>, vector<1x128xf32>
    %15 = vector.broadcast %14 : vector<1x128xf32> to vector<16x128xf32>
    %16 = arith.addf %13, %15 : vector<16x128xf32>
    %cst_12 = arith.constant 0.000000e+00 : f32
    %17 = vector.broadcast %cst_12 : f32 to vector<16x128xf32>
    %18 = arith.cmpf ogt, %16, %17 : vector<16x128xf32>
    %cst_13 = arith.constant 0.00999999977 : f32
    %19 = vector.broadcast %cst_13 : f32 to vector<16x128xf32>
    %20 = arith.mulf %19, %16 : vector<16x128xf32>
    %21 = arith.select %18, %16, %20 : vector<16x128xi1>, vector<16x128xf32>
    %22 = arith.truncf %21 : vector<16x128xf32> to vector<16x128xbf16>
    %c0_14 = arith.constant 0 : index
    %c0_15 = arith.constant 0 : index
    %23 = vector.load %arg6[%c0_14, %c0_15] : memref<128x128xbf16, #tpu.memory_space<vmem>>, vector<128x128xbf16>
    %cst_16 = arith.constant dense<0.000000e+00> : vector<16x128xf32>
    %24 = tpu.matmul %22, %23, %cst_16 {dimension_numbers = #tpu.dot_dimension_numbers<[1], [0], [0], [1], [0, 0, 1, 1], [], []>} : vector<16x128xbf16>, vector<128x128xbf16>, vector<16x128xf32> -> vector<16x128xf32>
    %c0_17 = arith.constant 0 : index
    %c0_18 = arith.constant 0 : index
    %25 = vector.load %arg7[%c0_17, %c0_18] : memref<1x128xf32, #tpu.memory_space<vmem>>, vector<1x128xf32>
    %26 = vector.broadcast %25 : vector<1x128xf32> to vector<16x128xf32>
    %27 = arith.addf %24, %26 : vector<16x128xf32>
    %28 = arith.truncf %27 : vector<16x128xf32> to vector<16x128xbf16>
    %c0_19 = arith.constant 0 : index
    %c0_20 = arith.constant 0 : index
    %29 = vector.load %arg8[%c0_19, %c0_20] : memref<16x128xbf16, #tpu.memory_space<vmem>>, vector<16x128xbf16>
    tpu.vector_store %arg8[%c0_19, %c0_20], %28 {strides = array<i32>} : memref<16x128xbf16, #tpu.memory_space<vmem>>, vector<16x128xbf16>,
    return
  }
  func.func @transform_0(%arg0: i32) -> (i32, i32) {
    %c0_i32 = arith.constant 0 : i32
    %c0_i32_0 = arith.constant 0 : i32
    return %arg0, %c0_i32 : i32, i32
  }
  func.func @transform_1(%arg0: i32) -> (i32, i32) {
    %c0_i32 = arith.constant 0 : i32
    %c0_i32_0 = arith.constant 0 : i32
    %c0_i32_1 = arith.constant 0 : i32
    return %c0_i32, %c0_i32_0 : i32, i32
  }
  func.func @transform_2(%arg0: i32) -> (i32, i32) {
    %c0_i32 = arith.constant 0 : i32
    %c0_i32_0 = arith.constant 0 : i32
    %c0_i32_1 = arith.constant 0 : i32
    return %c0_i32, %c0_i32_0 : i32, i32
  }
  func.func @transform_3(%arg0: i32) -> (i32, i32) {
    %c0_i32 = arith.constant 0 : i32
    %c0_i32_0 = arith.constant 0 : i32
    %c0_i32_1 = arith.constant 0 : i32
    return %c0_i32, %c0_i32_0 : i32, i32
  }
  func.func @transform_4(%arg0: i32) -> (i32, i32) {
    %c0_i32 = arith.constant 0 : i32
    %c0_i32_0 = arith.constant 0 : i32
    %c0_i32_1 = arith.constant 0 : i32
    return %c0_i32, %c0_i32_0 : i32, i32
  }
  func.func @transform_5(%arg0: i32) -> (i32, i32) {
    %c0_i32 = arith.constant 0 : i32
    %c0_i32_0 = arith.constant 0 : i32
    %c0_i32_1 = arith.constant 0 : i32
    return %c0_i32, %c0_i32_0 : i32, i32
  }
  func.func @transform_6(%arg0: i32) -> (i32, i32) {
    %c0_i32 = arith.constant 0 : i32
    %c0_i32_0 = arith.constant 0 : i32
    %c0_i32_1 = arith.constant 0 : i32
    return %c0_i32, %c0_i32_0 : i32, i32
  }
  func.func @transform_7(%arg0: i32) -> (i32, i32) {
    %c0_i32 = arith.constant 0 : i32
    %c0_i32_0 = arith.constant 0 : i32
    return %arg0, %c0_i32 : i32, i32
  }
}

module attributes {stable_mosaic.version = 11 : i64} {
  func.func @ctm_net_kernel(%arg0: i32, %arg1: memref<16x32xbf16, #tpu.memory_space<vmem>>, %arg2: memref<32x128xbf16, #tpu.memory_space<vmem>>, %arg3: memref<1x128xf32, #tpu.memory_space<vmem>>, %arg4: memref<128x128xbf16, #tpu.memory_space<vmem>>, %arg5: memref<1x128xf32, #tpu.memory_space<vmem>>, %arg6: memref<128x128xbf16, #tpu.memory_space<vmem>>, %arg7: memref<1x128xf32, #tpu.memory_space<vmem>>, %arg8: memref<16x128xbf16, #tpu.memory_space<vmem>>) attributes {dimension_semantics = [#tpu.dimension_semantics<parallel>], iteration_bounds = array<i64: 1>, scalar_prefetch = 0 : i64, scratch_operands = 0 : i64, tpu.core_type = #tpu.core_type<tc>, window_params = [{transform_indices = @transform_0, window_bounds = array<i64: 16, 32>}, {pipeline_mode = #tpu.pipeline_mode<synchronous>, transform_indices = @transform_1, window_bounds = array<i64: 32, 128>}, {pipeline_mode = #tpu.pipeline_mode<synchronous>, transform_indices = @transform_2, window_bounds = array<i64: 1, 128>}, {pipeline_mode = #tpu.pipeline_mode<synchronous>, transform_indices = @transform_3, window_bounds = array<i64: 128, 128>}, {pipeline_mode = #tpu.pipeline_mode<synchronous>, transform_indices = @transform_4, window_bounds = array<i64: 1, 128>}, {pipeline_mode = #tpu.pipeline_mode<synchronous>, transform_indices = @transform_5, window_bounds = array<i64: 128, 128>}, {pipeline_mode = #tpu.pipeline_mode<synchronous>, transform_indices = @transform_6, window_bounds = array<i64: 1, 128>}, {transform_indices = @transform_7, window_bounds = array<i64: 16, 128>}]} {
    %c0 = arith.constant 0 : index
    %c0_0 = arith.constant 0 : index
    %0 = vector.load %arg1[%c0, %c0_0] : memref<16x32xbf16, #tpu.memory_space<vmem>>, vector<16x32xbf16>
    %c0_1 = arith.constant 0 : index
    %c0_2 = arith.constant 0 : index
    %1 = vector.load %arg2[%c0_1, %c0_2] : memref<32x128xbf16, #tpu.memory_space<vmem>>, vector<32x128xbf16>
    %cst = arith.constant dense<0.000000e+00> : vector<16x128xf32>
    %2 = tpu.matmul %0, %1, %cst {dimension_numbers = #tpu.dot_dimension_numbers<[1], [0], [0], [1], [0, 0, 1, 1], [], []>} : vector<16x32xbf16>, vector<32x128xbf16>, vector<16x128xf32> -> vector<16x128xf32>
    %c0_3 = arith.constant 0 : index
    %c0_4 = arith.constant 0 : index
    %3 = vector.load %arg3[%c0_3, %c0_4] : memref<1x128xf32, #tpu.memory_space<vmem>>, vector<1x128xf32>
    %4 = vector.broadcast %3 : vector<1x128xf32> to vector<16x128xf32>
    %5 = arith.addf %2, %4 : vector<16x128xf32>
    %cst_5 = arith.constant 0.000000e+00 : f32
    %6 = vector.broadcast %cst_5 : f32 to vector<16x128xf32>
    %7 = arith.cmpf ogt, %5, %6 : vector<16x128xf32>
    %cst_6 = arith.constant 0.00999999977 : f32
    %8 = vector.broadcast %cst_6 : f32 to vector<16x128xf32>
    %9 = arith.mulf %8, %5 : vector<16x128xf32>
    %10 = arith.select %7, %5, %9 : vector<16x128xi1>, vector<16x128xf32>
    %11 = arith.truncf %10 : vector<16x128xf32> to vector<16x128xbf16>
    %c0_7 = arith.constant 0 : index
    %c0_8 = arith.constant 0 : index
    %12 = vector.load %arg4[%c0_7, %c0_8] : memref<128x128xbf16, #tpu.memory_space<vmem>>, vector<128x128xbf16>
    %cst_9 = arith.constant dense<0.000000e+00> : vector<16x128xf32>
    %13 = tpu.matmul %11, %12, %cst_9 {dimension_numbers = #tpu.dot_dimension_numbers<[1], [0], [0], [1], [0, 0, 1, 1], [], []>} : vector<16x128xbf16>, vector<128x128xbf16>, vector<16x128xf32> -> vector<16x128xf32>
    %c0_10 = arith.constant 0 : index
    %c0_11 = arith.constant 0 : index
    %14 = vector.load %arg5[%c0_10, %c0_11] : memref<1x128xf32, #tpu.memory_space<vmem>>, vector<1x128xf32>
    %15 = vector.broadcast %14 : vector<1x128xf32> to vector<16x128xf32>
    %16 = arith.addf %13, %15 : vector<16x128xf32>
    %cst_12 = arith.constant 0.000000e+00 : f32
    %17 = vector.broadcast %cst_12 : f32 to vector<16x128xf32>
    %18 = arith.cmpf ogt, %16, %17 : vector<16x128xf32>
    %cst_13 = arith.constant 0.00999999977 : f32
    %19 = vector.broadcast %cst_13 : f32 to vector<16x128xf32>
    %20 = arith.mulf %19, %16 : vector<16x128xf32>
    %21 = arith.select %18, %16, %20 : vector<16x128xi1>, vector<16x128xf32>
    %22 = arith.truncf %21 : vector<16x128xf32> to vector<16x128xbf16>
    %c0_14 = arith.constant 0 : index
    %c0_15 = arith.constant 0 : index
    %23 = vector.load %arg6[%c0_14, %c0_15] : memref<128x128xbf16, #tpu.memory_space<vmem>>, vector<128x128xbf16>
    %cst_16 = arith.constant dense<0.000000e+00> : vector<16x128xf32>
    %24 = tpu.matmul %22, %23, %cst_16 {dimension_numbers = #tpu.dot_dimension_numbers<[1], [0], [0], [1], [0, 0, 1, 1], [], []>} : vector<16x128xbf16>, vector<128x128xbf16>, vector<16x128xf32> -> vector<16x128xf32>
    %c0_17 = arith.constant 0 : index
    %c0_18 = arith.constant 0 : index
    %25 = vector.load %arg7[%c0_17, %c0_18] : memref<1x128xf32, #tpu.memory_space<vmem>>, vector<1x128xf32>
    %26 = vector.broadcast %25 : vector<1x128xf32> to vector<16x128xf32>
    %27 = arith.addf %24, %26 : vector<16x128xf32>
    %28 = arith.truncf %27 : vector<16x128xf32> to vector<16x128xbf16>
    %c0_19 = arith.constant 0 : index
    %c0_20 = arith.constant 0 : index
    %29 = vector.load %arg8[%c0_19, %c0_20] : memref<16x128xbf16, #tpu.memory_space<vmem>>, vector<16x128xbf16>
    tpu.vector_store %arg8[%c0_19, %c0_20], %28 {strides = array<i32>} : memref<16x128xbf16, #tpu.memory_space<vmem>>, vector<16x128xbf16>,
    return
  }
  func.func @transform_0(%arg0: i32) -> (i32, i32) {
    %c0_i32 = arith.constant 0 : i32
    %c0_i32_0 = arith.constant 0 : i32
    return %arg0, %c0_i32 : i32, i32
  }
  func.func @transform_1(%arg0: i32) -> (i32, i32) {
    %c0_i32 = arith.constant 0 : i32
    %c0_i32_0 = arith.constant 0 : i32
    %c0_i32_1 = arith.constant 0 : i32
    return %c0_i32, %c0_i32_0 : i32, i32
  }
  func.func @transform_2(%arg0: i32) -> (i32, i32) {
    %c0_i32 = arith.constant 0 : i32
    %c0_i32_0 = arith.constant 0 : i32
    %c0_i32_1 = arith.constant 0 : i32
    return %c0_i32, %c0_i32_0 : i32, i32
  }
  func.func @transform_3(%arg0: i32) -> (i32, i32) {
    %c0_i32 = arith.constant 0 : i32
    %c0_i32_0 = arith.constant 0 : i32
    %c0_i32_1 = arith.constant 0 : i32
    return %c0_i32, %c0_i32_0 : i32, i32
  }
  func.func @transform_4(%arg0: i32) -> (i32, i32) {
    %c0_i32 = arith.constant 0 : i32
    %c0_i32_0 = arith.constant 0 : i32
    %c0_i32_1 = arith.constant 0 : i32
    return %c0_i32, %c0_i32_0 : i32, i32
  }
  func.func @transform_5(%arg0: i32) -> (i32, i32) {
    %c0_i32 = arith.constant 0 : i32
    %c0_i32_0 = arith.constant 0 : i32
    %c0_i32_1 = arith.constant 0 : i32
    return %c0_i32, %c0_i32_0 : i32, i32
  }
  func.func @transform_6(%arg0: i32) -> (i32, i32) {
    %c0_i32 = arith.constant 0 : i32
    %c0_i32_0 = arith.constant 0 : i32
    %c0_i32_1 = arith.constant 0 : i32
    return %c0_i32, %c0_i32_0 : i32, i32
  }
  func.func @transform_7(%arg0: i32) -> (i32, i32) {
    %c0_i32 = arith.constant 0 : i32
    %c0_i32_0 = arith.constant 0 : i32
    return %arg0, %c0_i32 : i32, i32
  }
}

</mosaic_0001>

<llo_original>
// kernel: tpu_custom_call.1
$region0: #{tpu_custom_call.1}
  #allocation0 [shape = 'u32[]', space=smem, size = 0x4, offset = 0x4, fixed_abs, tag = 'smem constant byte address 0x4 - core index']
  #allocation1 [shape = 'u32[144,128]{1,0:T(1,128)}', space=vmem, size = 0x12000, scoped, tag = 'internal scratch']
  %s0 = inlined_call_operand.hbm [shape: bf16[16,32], index: 0, kind: input, shape index: {}]
  %s1 = inlined_call_operand.hbm [shape: bf16[32,128], index: 1, kind: input, shape index: {}]
  %s2 = inlined_call_operand.vmem [shape: f32[1,128], index: 2, kind: input, shape index: {}]
  %s3 = inlined_call_operand.hbm [shape: bf16[128,128], index: 3, kind: input, shape index: {}]
  %s4 = inlined_call_operand.vmem [shape: f32[1,128], index: 4, kind: input, shape index: {}]
  %s5 = inlined_call_operand.hbm [shape: bf16[128,128], index: 5, kind: input, shape index: {}]
  %s6 = inlined_call_operand.vmem [shape: f32[1,128], index: 6, kind: input, shape index: {}]
  %s7 = inlined_call_operand.hbm [shape: bf16[16,128], index: 7, kind: output, shape index: {}]
  %s8 = sld [smem:[#allocation0]]
  $region54: #{tpu_custom_call.1} parent=0
    _
  %s10 = ssub.s32 1, %s8
  %s11 = scalar_select 0, %s10, %s8
  $region1: #{tpu_custom_call.1} parent=0
    #allocation2 [shape = 'u8[4096]{0}', space=vmem, size = 0x1000, scoped, tag = 'input window, operand 0, single buffered']
    #allocation3 [shape = 's32[1]{0}', space=sflag, size = 0x4, scoped, tag = 'scoped memory for tpu_custom_call.1']
    #allocation4 [shape = 's32[1]{0}', space=sflag, size = 0x4, scoped, tag = 'scoped memory for tpu_custom_call.1']
    #allocation5 [shape = 'u8[8192]{0}', space=vmem, size = 0x2000, scoped, tag = 'input window, operand 1, single buffered']
    #allocation6 [shape = 's32[1]{0}', space=sflag, size = 0x4, scoped, tag = 'scoped memory for tpu_custom_call.1']
    #allocation7 [shape = 'u8[32768]{0}', space=vmem, size = 0x8000, scoped, tag = 'input window, operand 3, single buffered']
    #allocation8 [shape = 'u8[32768]{0}', space=vmem, size = 0x8000, scoped, tag = 'input window, operand 5, single buffered']
    #allocation9 [shape = 's32[1]{0}', space=sflag, size = 0x4, scoped, tag = 'scoped memory for tpu_custom_call.1']
    #allocation10 [shape = 'u8[4096]{0}', space=vmem, size = 0x1000, scoped, tag = 'output window, operand 0, single buffered']
    %12 = vsyncpa [#allocation3], 0
    %13 = vsyncpa [#allocation6], 0
    %14 = vsyncpa [#allocation9], 0
    %15 = vsyncpa [#allocation4], 0
    // Predicated region
    $region2: #{tpu_custom_call.1} parent=1 // pred_check
      _
    $region3: #{tpu_custom_call.1} parent=1 // pred_check_branch
      %17 = sbr.rel (0) target = $region5
    $region4: #{tpu_custom_call.1} parent=1 // pred_region
      %s19 = ssub.s32 128, 128
      %20 = vsyncadd [#allocation3], %s19
      %s21 = sshll.u32 [#allocation2], 4
      %s22 = int_to_ptr.vmem [resolvable:$true] %s21
      %27 = dma.hbm_to_vmem [thread:$0]  %s0, 128, %s22, [#allocation3], 64, 64, 4
    $region5: #{tpu_custom_call.1} parent=1 // pred_fallthru
      _
    // Predicated region
    $region6: #{tpu_custom_call.1} parent=1 // pred_check
      _
    $region7: #{tpu_custom_call.1} parent=1 // pred_check_branch
      %29 = sbr.rel (0) target = $region9
    $region8: #{tpu_custom_call.1} parent=1 // pred_region
      %s31 = ssub.s32 256, 256
      %32 = vsyncadd [#allocation6], %s31
      %s33 = sshll.u32 [#allocation5], 4
      %s34 = int_to_ptr.vmem [resolvable:$true] %s33
      %39 = dma.hbm_to_vmem [thread:$0]  %s1, 256, %s34, [#allocation6], 64, 64, 4
    $region9: #{tpu_custom_call.1} parent=1 // pred_fallthru
      _
    // Predicated region
    $region10: #{tpu_custom_call.1} parent=1 // pred_check
      _
    $region11: #{tpu_custom_call.1} parent=1 // pred_check_branch
      %41 = sbr.rel (0) target = $region13
    $region12: #{tpu_custom_call.1} parent=1 // pred_region
      _
    $region13: #{tpu_custom_call.1} parent=1 // pred_fallthru
      _
    // Predicated region
    $region14: #{tpu_custom_call.1} parent=1 // pred_check
      _
    $region15: #{tpu_custom_call.1} parent=1 // pred_check_branch
      %43 = sbr.rel (0) target = $region17
    $region16: #{tpu_custom_call.1} parent=1 // pred_region
      %s45 = ssub.s32 1024, 1024
      %46 = vsyncadd [#allocation6], %s45
      %s47 = sshll.u32 [#allocation7], 4
      %s48 = int_to_ptr.vmem [resolvable:$true] %s47
      %53 = dma.hbm_to_vmem [thread:$0]  %s3, 1024, %s48, [#allocation6], 64, 64, 4
    $region17: #{tpu_custom_call.1} parent=1 // pred_fallthru
      _
    // Predicated region
    $region18: #{tpu_custom_call.1} parent=1 // pred_check
      _
    $region19: #{tpu_custom_call.1} parent=1 // pred_check_branch
      %55 = sbr.rel (0) target = $region21
    $region20: #{tpu_custom_call.1} parent=1 // pred_region
      _
    $region21: #{tpu_custom_call.1} parent=1 // pred_fallthru
      _
    // Predicated region
    $region22: #{tpu_custom_call.1} parent=1 // pred_check
      _
    $region23: #{tpu_custom_call.1} parent=1 // pred_check_branch
      %57 = sbr.rel (0) target = $region25
    $region24: #{tpu_custom_call.1} parent=1 // pred_region
      %s59 = ssub.s32 1024, 1024
      %60 = vsyncadd [#allocation9], %s59
      %s61 = sshll.u32 [#allocation8], 4
      %s62 = int_to_ptr.vmem [resolvable:$true] %s61
      %67 = dma.hbm_to_vmem [thread:$0]  %s5, 1024, %s62, [#allocation9], 64, 64, 4
    $region25: #{tpu_custom_call.1} parent=1 // pred_fallthru
      _
    // Predicated region
    $region26: #{tpu_custom_call.1} parent=1 // pred_check
      _
    $region27: #{tpu_custom_call.1} parent=1 // pred_check_branch
      %69 = sbr.rel (0) target = $region29
    $region28: #{tpu_custom_call.1} parent=1 // pred_region
      _
    $region29: #{tpu_custom_call.1} parent=1 // pred_fallthru
      _
    // Predicated region
    $region30: #{tpu_custom_call.1} parent=1 // pred_check
      _
    $region31: #{tpu_custom_call.1} parent=1 // pred_check_branch
      %71 = sbr.rel (0) target = $region33
    $region32: #{tpu_custom_call.1} parent=1 // pred_region
      %72 = dma.done [#allocation3], 128
    $region33: #{tpu_custom_call.1} parent=1 // pred_fallthru
      _
    // Predicated region
    $region34: #{tpu_custom_call.1} parent=1 // pred_check
      _
    $region35: #{tpu_custom_call.1} parent=1 // pred_check_branch
      %74 = sbr.rel (0) target = $region37
    $region36: #{tpu_custom_call.1} parent=1 // pred_region
      %75 = dma.done [#allocation6], 256
    $region37: #{tpu_custom_call.1} parent=1 // pred_fallthru
      _
    // Predicated region
    $region38: #{tpu_custom_call.1} parent=1 // pred_check
      _
    $region39: #{tpu_custom_call.1} parent=1 // pred_check_branch
      %77 = sbr.rel (0) target = $region41
    $region40: #{tpu_custom_call.1} parent=1 // pred_region
      %78 = dma.done [#allocation6], 1024
    $region41: #{tpu_custom_call.1} parent=1 // pred_fallthru
      _
    // Predicated region
    $region42: #{tpu_custom_call.1} parent=1 // pred_check
      _
    $region43: #{tpu_custom_call.1} parent=1 // pred_check_branch
      %80 = sbr.rel (0) target = $region45
    $region44: #{tpu_custom_call.1} parent=1 // pred_region
      %81 = dma.done [#allocation9], 1024
    $region45: #{tpu_custom_call.1} parent=1 // pred_fallthru
      _
    %v83 = vld [vmem:[#allocation2] sm:$0xf]
    %v84 = vld [vmem:[#allocation2 + $0x4] sm:$0xf]
    %v85 = vld [vmem:[#allocation5] sm:$0xf]
    %v86 = vld [vmem:[#allocation5 + $0x4] sm:$0xf]
    %v87 = vld [vmem:[#allocation5 + $0x8] sm:$0xf]
    %v88 = vld [vmem:[#allocation5 + $0xc] sm:$0xf]
    %v89 = vld [vmem:[%s2] sm:$0x1]
    %v91 = vlaneseq
    %v92 = vshrl.u32 %v91, 7
    %v93 = vsub.s32 0, %v92
    %v94 = vrot.slane %v89, %v93
    %v98 = vunpack.c.l.b16 %v83
    %v99 = vunpack.c.l.b16 %v84
    %v100 = vpack.c.b16 %v99, %v98
    %v105 = vunpack.c.l.b16 %v85
    %v106 = vunpack.c.l.b16 %v86
    %v107 = vunpack.c.l.b16 %v87
    %v108 = vunpack.c.l.b16 %v88
    %v109 = vpack.c.b16 %v106, %v105
    %v110 = vpack.c.b16 %v108, %v107
    %vm113 = vcmask 261120
    %v115 = vsel %vm113, %v100, 0
    %117 = vmatprep.subr.bf16.mxu0 0
    %118 = vmatpush1.bf16.msra.mxu0 %v109
    %119 = vmatprep.subr.bf16.mxu0 0
    %120 = vmatpush1.bf16.msra.mxu0 %v110
    %121 = vmatprep.subr.bf16.mxu0 0
    %122 = vmatpush1.bf16.msra.mxu0 0
    %123 = vmatprep.subr.bf16.mxu0 0
    %124 = vmatpush1.bf16.msra.mxu0 0
    %125 = vmatprep.subr.bf16.mxu0 0
    %126 = vmatpush1.bf16.msra.mxu0 0
    %127 = vmatprep.subr.bf16.mxu0 0
    %128 = vmatpush1.bf16.msra.mxu0 0
    %129 = vmatprep.subr.bf16.mxu0 0
    %130 = vmatpush1.bf16.msra.mxu0 0
    %131 = vmatprep.subr.bf16.mxu0 0
    %132 = vmatpush1.bf16.msra.mxu0 0
    %133 = vmatprep.subr.bf16.mxu0 0
    %134 = vmatpush1.bf16.msra.mxu0 0
    %135 = vmatprep.subr.bf16.mxu0 0
    %136 = vmatpush1.bf16.msra.mxu0 0
    %137 = vmatprep.subr.bf16.mxu0 0
    %138 = vmatpush1.bf16.msra.mxu0 0
    %139 = vmatprep.subr.bf16.mxu0 0
    %140 = vmatpush1.bf16.msra.mxu0 0
    %141 = vmatprep.subr.bf16.mxu0 0
    %142 = vmatpush1.bf16.msra.mxu0 0
    %143 = vmatprep.subr.bf16.mxu0 0
    %144 = vmatpush1.bf16.msra.mxu0 0
    %145 = vmatprep.subr.bf16.mxu0 0
    %146 = vmatpush1.bf16.msra.mxu0 0
    %147 = vmatprep.subr.bf16.mxu0 0
    %148 = vmatpush1.bf16.msra.mxu0 0
    %149 = vmatprep.mubr.bf16.mxu0 0
    %150 = vmatmul.mubr.bf16.gmra.mrb[0].mxu0 %v115
    %v151 = vpop.f32.mrb[0].mxu0
    %v152 = vadd.f32 %v94, %v151
    %v153 = vpop.f32.mrb[0].mxu0
    %v154 = vpop.f32.mrb[0].mxu0
    %v155 = vadd.f32 %v94, %v154
    %v156 = vpop.f32.mrb[0].mxu0
    %157 = vdwg.mxu0
    %vm158 = vcmp.gt.f32.partialorder %v152, 0.0
    %vm159 = vcmp.gt.f32.partialorder %v155, 0.0
    %v160 = vmul.f32 %v152, 0.01
    %v161 = vmul.f32 %v155, 0.01
    %v162 = vsel %vm158, %v152, %v160
    %v163 = vsel %vm159, %v155, %v161
    %v164 = vpack.c.bf16 %v163, %v162
    %v165 = vld [vmem:[#allocation7] sm:$0xf]
    %v166 = vld [vmem:[#allocation7 + $0x4] sm:$0xf]
    %v167 = vld [vmem:[#allocation7 + $0x8] sm:$0xf]
    %v168 = vld [vmem:[#allocation7 + $0xc] sm:$0xf]
    %v169 = vld [vmem:[#allocation7 + $0x10] sm:$0xf]
    %v170 = vld [vmem:[#allocation7 + $0x14] sm:$0xf]
    %v171 = vld [vmem:[#allocation7 + $0x18] sm:$0xf]
    %v172 = vld [vmem:[#allocation7 + $0x1c] sm:$0xf]
    %v173 = vld [vmem:[#allocation7 + $0x20] sm:$0xf]
    %v174 = vld [vmem:[#allocation7 + $0x24] sm:$0xf]
    %v175 = vld [vmem:[#allocation7 + $0x28] sm:$0xf]
    %v176 = vld [vmem:[#allocation7 + $0x2c] sm:$0xf]
    %v177 = vld [vmem:[#allocation7 + $0x30] sm:$0xf]
    %v178 = vld [vmem:[#allocation7 + $0x34] sm:$0xf]
    %v179 = vld [vmem:[#allocation7 + $0x38] sm:$0xf]
    %v180 = vld [vmem:[#allocation7 + $0x3c] sm:$0xf]
    %v181 = vld [vmem:[%s4] sm:$0x1]
    %v183 = vlaneseq
    %v184 = vshrl.u32 %v183, 7
    %v185 = vsub.s32 0, %v184
    %v186 = vrot.slane %v181, %v185
    %v204 = vunpack.c.l.b16 %v165
    %v205 = vunpack.c.l.b16 %v166
    %v206 = vunpack.c.l.b16 %v167
    %v207 = vunpack.c.l.b16 %v168
    %v208 = vunpack.c.l.b16 %v169
    %v209 = vunpack.c.l.b16 %v170
    %v210 = vunpack.c.l.b16 %v171
    %v211 = vunpack.c.l.b16 %v172
    %v212 = vunpack.c.l.b16 %v173
    %v213 = vunpack.c.l.b16 %v174
    %v214 = vunpack.c.l.b16 %v175
    %v215 = vunpack.c.l.b16 %v176
    %v216 = vunpack.c.l.b16 %v177
    %v217 = vunpack.c.l.b16 %v178
    %v218 = vunpack.c.l.b16 %v179
    %v219 = vunpack.c.l.b16 %v180
    %v220 = vpack.c.b16 %v205, %v204
    %v221 = vpack.c.b16 %v207, %v206
    %v222 = vpack.c.b16 %v209, %v208
    %v223 = vpack.c.b16 %v211, %v210
    %v224 = vpack.c.b16 %v213, %v212
    %v225 = vpack.c.b16 %v215, %v214
    %v226 = vpack.c.b16 %v217, %v216
    %v227 = vpack.c.b16 %v219, %v218
    %236 = vmatprep.subr.bf16.mxu0 0
    %237 = vmatpush1.bf16.msra.mxu0 %v220
    %238 = vmatprep.subr.bf16.mxu0 0
    %239 = vmatpush1.bf16.msra.mxu0 %v221
    %240 = vmatprep.subr.bf16.mxu0 0
    %241 = vmatpush1.bf16.msra.mxu0 %v222
    %242 = vmatprep.subr.bf16.mxu0 0
    %243 = vmatpush1.bf16.msra.mxu0 %v223
    %244 = vmatprep.subr.bf16.mxu0 0
    %245 = vmatpush1.bf16.msra.mxu0 %v224
    %246 = vmatprep.subr.bf16.mxu0 0
    %247 = vmatpush1.bf16.msra.mxu0 %v225
    %248 = vmatprep.subr.bf16.mxu0 0
    %249 = vmatpush1.bf16.msra.mxu0 %v226
    %250 = vmatprep.subr.bf16.mxu0 0
    %251 = vmatpush1.bf16.msra.mxu0 %v227
    %252 = vmatprep.subr.bf16.mxu0 0
    %253 = vmatpush1.bf16.msra.mxu0 0
    %254 = vmatprep.subr.bf16.mxu0 0
    %255 = vmatpush1.bf16.msra.mxu0 0
    %256 = vmatprep.subr.bf16.mxu0 0
    %257 = vmatpush1.bf16.msra.mxu0 0
    %258 = vmatprep.subr.bf16.mxu0 0
    %259 = vmatpush1.bf16.msra.mxu0 0
    %260 = vmatprep.subr.bf16.mxu0 0
    %261 = vmatpush1.bf16.msra.mxu0 0
    %262 = vmatprep.subr.bf16.mxu0 0
    %263 = vmatpush1.bf16.msra.mxu0 0
    %264 = vmatprep.subr.bf16.mxu0 0
    %265 = vmatpush1.bf16.msra.mxu0 0
    %266 = vmatprep.subr.bf16.mxu0 0
    %267 = vmatpush1.bf16.msra.mxu0 0
    %268 = vmatprep.mubr.bf16.mxu0 0
    %269 = vmatmul.mubr.bf16.gmra.mrb[0].mxu0 %v164
    %v270 = vpop.f32.mrb[0].mxu0
    %v271 = vadd.f32 %v186, %v270
    %v272 = vpop.f32.mrb[0].mxu0
    %v273 = vpop.f32.mrb[0].mxu0
    %v274 = vadd.f32 %v186, %v273
    %v275 = vpop.f32.mrb[0].mxu0
    %276 = vdwg.mxu0
    %vm277 = vcmp.gt.f32.partialorder %v271, 0.0
    %vm278 = vcmp.gt.f32.partialorder %v274, 0.0
    %v279 = vmul.f32 %v271, 0.01
    %v280 = vmul.f32 %v274, 0.01
    %v281 = vsel %vm277, %v271, %v279
    %v282 = vsel %vm278, %v274, %v280
    %v283 = vpack.c.bf16 %v282, %v281
    %v284 = vld [vmem:[#allocation8] sm:$0xf]
    %v285 = vld [vmem:[#allocation8 + $0x4] sm:$0xf]
    %v286 = vld [vmem:[#allocation8 + $0x8] sm:$0xf]
    %v287 = vld [vmem:[#allocation8 + $0xc] sm:$0xf]
    %v288 = vld [vmem:[#allocation8 + $0x10] sm:$0xf]
    %v289 = vld [vmem:[#allocation8 + $0x14] sm:$0xf]
    %v290 = vld [vmem:[#allocation8 + $0x18] sm:$0xf]
    %v291 = vld [vmem:[#allocation8 + $0x1c] sm:$0xf]
    %v292 = vld [vmem:[#allocation8 + $0x20] sm:$0xf]
    %v293 = vld [vmem:[#allocation8 + $0x24] sm:$0xf]
    %v294 = vld [vmem:[#allocation8 + $0x28] sm:$0xf]
    %v295 = vld [vmem:[#allocation8 + $0x2c] sm:$0xf]
    %v296 = vld [vmem:[#allocation8 + $0x30] sm:$0xf]
    %v297 = vld [vmem:[#allocation8 + $0x34] sm:$0xf]
    %v298 = vld [vmem:[#allocation8 + $0x38] sm:$0xf]
    %v299 = vld [vmem:[#allocation8 + $0x3c] sm:$0xf]
    %v300 = vld [vmem:[%s6] sm:$0x1]
    %v302 = vlaneseq
    %v303 = vshrl.u32 %v302, 7
    %v304 = vsub.s32 0, %v303
    %v305 = vrot.slane %v300, %v304
    %v323 = vunpack.c.l.b16 %v284
    %v324 = vunpack.c.l.b16 %v285
    %v325 = vunpack.c.l.b16 %v286
    %v326 = vunpack.c.l.b16 %v287
    %v327 = vunpack.c.l.b16 %v288
    %v328 = vunpack.c.l.b16 %v289
    %v329 = vunpack.c.l.b16 %v290
    %v330 = vunpack.c.l.b16 %v291
    %v331 = vunpack.c.l.b16 %v292
    %v332 = vunpack.c.l.b16 %v293
    %v333 = vunpack.c.l.b16 %v294
    %v334 = vunpack.c.l.b16 %v295
    %v335 = vunpack.c.l.b16 %v296
    %v336 = vunpack.c.l.b16 %v297
    %v337 = vunpack.c.l.b16 %v298
    %v338 = vunpack.c.l.b16 %v299
    %v339 = vpack.c.b16 %v324, %v323
    %v340 = vpack.c.b16 %v326, %v325
    %v341 = vpack.c.b16 %v328, %v327
    %v342 = vpack.c.b16 %v330, %v329
    %v343 = vpack.c.b16 %v332, %v331
    %v344 = vpack.c.b16 %v334, %v333
    %v345 = vpack.c.b16 %v336, %v335
    %v346 = vpack.c.b16 %v338, %v337
    %355 = vmatprep.subr.bf16.mxu0 0
    %356 = vmatpush1.bf16.msra.mxu0 %v339
    %357 = vmatprep.subr.bf16.mxu0 0
    %358 = vmatpush1.bf16.msra.mxu0 %v340
    %359 = vmatprep.subr.bf16.mxu0 0
    %360 = vmatpush1.bf16.msra.mxu0 %v341
    %361 = vmatprep.subr.bf16.mxu0 0
    %362 = vmatpush1.bf16.msra.mxu0 %v342
    %363 = vmatprep.subr.bf16.mxu0 0
    %364 = vmatpush1.bf16.msra.mxu0 %v343
    %365 = vmatprep.subr.bf16.mxu0 0
    %366 = vmatpush1.bf16.msra.mxu0 %v344
    %367 = vmatprep.subr.bf16.mxu0 0
    %368 = vmatpush1.bf16.msra.mxu0 %v345
    %369 = vmatprep.subr.bf16.mxu0 0
    %370 = vmatpush1.bf16.msra.mxu0 %v346
    %371 = vmatprep.subr.bf16.mxu0 0
    %372 = vmatpush1.bf16.msra.mxu0 0
    %373 = vmatprep.subr.bf16.mxu0 0
    %374 = vmatpush1.bf16.msra.mxu0 0
    %375 = vmatprep.subr.bf16.mxu0 0
    %376 = vmatpush1.bf16.msra.mxu0 0
    %377 = vmatprep.subr.bf16.mxu0 0
    %378 = vmatpush1.bf16.msra.mxu0 0
    %379 = vmatprep.subr.bf16.mxu0 0
    %380 = vmatpush1.bf16.msra.mxu0 0
    %381 = vmatprep.subr.bf16.mxu0 0
    %382 = vmatpush1.bf16.msra.mxu0 0
    %383 = vmatprep.subr.bf16.mxu0 0
    %384 = vmatpush1.bf16.msra.mxu0 0
    %385 = vmatprep.subr.bf16.mxu0 0
    %386 = vmatpush1.bf16.msra.mxu0 0
    %387 = vmatprep.mubr.bf16.mxu0 0
    %388 = vmatmul.mubr.bf16.gmra.mrb[0].mxu0 %v283
    %v389 = vpop.f32.mrb[0].mxu0
    %v390 = vadd.f32 %v305, %v389
    %v391 = vpop.f32.mrb[0].mxu0
    %v392 = vpop.f32.mrb[0].mxu0
    %v393 = vadd.f32 %v305, %v392
    %v394 = vpop.f32.mrb[0].mxu0
    %395 = vdwg.mxu0
    %v396 = vpack.c.bf16 %v393, %v390
    %v398 = vunpack.c.l.b16 %v396
    %v399 = vunpack.c.h.b16 %v396
    %v400 = vpack.c.b16 %v398, %v398
    %v401 = vpack.c.b16 %v399, %v399
    %404 = vst [vmem:[#allocation10] sm:$0xf] %v400
    %405 = vst [vmem:[#allocation10 + $0x4] sm:$0xf] %v401
    // Predicated region
    $region46: #{tpu_custom_call.1} parent=1 // pred_check
      _
    $region47: #{tpu_custom_call.1} parent=1 // pred_check_branch
      %407 = sbr.rel (0) target = $region49
    $region48: #{tpu_custom_call.1} parent=1 // pred_region
      %s409 = ssub.s32 128, 128
      %410 = vsyncadd [#allocation4], %s409
      %s411 = sshll.u32 [#allocation10], 4
      %s412 = int_to_ptr.vmem [resolvable:$true] %s411
      %417 = dma.vmem_to_hbm [thread:$0]  %s412, 128, %s7, [#allocation4], 64, 64, 4
    $region49: #{tpu_custom_call.1} parent=1 // pred_fallthru
      _
    // Predicated region
    $region50: #{tpu_custom_call.1} parent=1 // pred_check
      _
    $region51: #{tpu_custom_call.1} parent=1 // pred_check_branch
      %419 = sbr.rel (0) target = $region53
    $region52: #{tpu_custom_call.1} parent=1 // pred_region
      %420 = dma.done [#allocation4], 128
    $region53: #{tpu_custom_call.1} parent=1 // pred_fallthru
      _
    %421 = vsyncpa [#allocation3], 1
    %422 = vsyncpa [#allocation6], 1
    %423 = vsyncpa [#allocation9], 1
    %424 = vsyncpa [#allocation4], 1

// kernel: tpu_custom_call.1
$region0: #{tpu_custom_call.1}
  #allocation0 [shape = 'u32[]', space=smem, size = 0x4, offset = 0x4, fixed_abs, tag = 'smem constant byte address 0x4 - core index']
  #allocation1 [shape = 'u32[144,128]{1,0:T(1,128)}', space=vmem, size = 0x12000, scoped, tag = 'internal scratch']
  %s0 = inlined_call_operand.hbm [shape: bf16[16,32], index: 0, kind: input, shape index: {}]
  %s1 = inlined_call_operand.hbm [shape: bf16[32,128], index: 1, kind: input, shape index: {}]
  %s2 = inlined_call_operand.vmem [shape: f32[1,128], index: 2, kind: input, shape index: {}]
  %s3 = inlined_call_operand.hbm [shape: bf16[128,128], index: 3, kind: input, shape index: {}]
  %s4 = inlined_call_operand.vmem [shape: f32[1,128], index: 4, kind: input, shape index: {}]
  %s5 = inlined_call_operand.hbm [shape: bf16[128,128], index: 5, kind: input, shape index: {}]
  %s6 = inlined_call_operand.vmem [shape: f32[1,128], index: 6, kind: input, shape index: {}]
  %s7 = inlined_call_operand.hbm [shape: bf16[16,128], index: 7, kind: output, shape index: {}]
  %s8 = sld [smem:[#allocation0]]
  $region54: #{tpu_custom_call.1} parent=0
    _
  %s10 = ssub.s32 1, %s8
  %s11 = scalar_select 0, %s10, %s8
  $region1: #{tpu_custom_call.1} parent=0
    #allocation2 [shape = 'u8[4096]{0}', space=vmem, size = 0x1000, scoped, tag = 'input window, operand 0, single buffered']
    #allocation3 [shape = 's32[1]{0}', space=sflag, size = 0x4, scoped, tag = 'scoped memory for tpu_custom_call.1']
    #allocation4 [shape = 's32[1]{0}', space=sflag, size = 0x4, scoped, tag = 'scoped memory for tpu_custom_call.1']
    #allocation5 [shape = 'u8[8192]{0}', space=vmem, size = 0x2000, scoped, tag = 'input window, operand 1, single buffered']
    #allocation6 [shape = 's32[1]{0}', space=sflag, size = 0x4, scoped, tag = 'scoped memory for tpu_custom_call.1']
    #allocation7 [shape = 'u8[32768]{0}', space=vmem, size = 0x8000, scoped, tag = 'input window, operand 3, single buffered']
    #allocation8 [shape = 'u8[32768]{0}', space=vmem, size = 0x8000, scoped, tag = 'input window, operand 5, single buffered']
    #allocation9 [shape = 's32[1]{0}', space=sflag, size = 0x4, scoped, tag = 'scoped memory for tpu_custom_call.1']
    #allocation10 [shape = 'u8[4096]{0}', space=vmem, size = 0x1000, scoped, tag = 'output window, operand 0, single buffered']
    %12 = vsyncpa [#allocation3], 0
    %13 = vsyncpa [#allocation6], 0
    %14 = vsyncpa [#allocation9], 0
    %15 = vsyncpa [#allocation4], 0
    // Predicated region
    $region2: #{tpu_custom_call.1} parent=1 // pred_check
      _
    $region3: #{tpu_custom_call.1} parent=1 // pred_check_branch
      %17 = sbr.rel (0) target = $region5
    $region4: #{tpu_custom_call.1} parent=1 // pred_region
      %s19 = ssub.s32 128, 128
      %20 = vsyncadd [#allocation3], %s19
      %s21 = sshll.u32 [#allocation2], 4
      %s22 = int_to_ptr.vmem [resolvable:$true] %s21
      %27 = dma.hbm_to_vmem [thread:$0]  %s0, 128, %s22, [#allocation3], 64, 64, 4
    $region5: #{tpu_custom_call.1} parent=1 // pred_fallthru
      _
    // Predicated region
    $region6: #{tpu_custom_call.1} parent=1 // pred_check
      _
    $region7: #{tpu_custom_call.1} parent=1 // pred_check_branch
      %29 = sbr.rel (0) target = $region9
    $region8: #{tpu_custom_call.1} parent=1 // pred_region
      %s31 = ssub.s32 256, 256
      %32 = vsyncadd [#allocation6], %s31
      %s33 = sshll.u32 [#allocation5], 4
      %s34 = int_to_ptr.vmem [resolvable:$true] %s33
      %39 = dma.hbm_to_vmem [thread:$0]  %s1, 256, %s34, [#allocation6], 64, 64, 4
    $region9: #{tpu_custom_call.1} parent=1 // pred_fallthru
      _
    // Predicated region
    $region10: #{tpu_custom_call.1} parent=1 // pred_check
      _
    $region11: #{tpu_custom_call.1} parent=1 // pred_check_branch
      %41 = sbr.rel (0) target = $region13
    $region12: #{tpu_custom_call.1} parent=1 // pred_region
      _
    $region13: #{tpu_custom_call.1} parent=1 // pred_fallthru
      _
    // Predicated region
    $region14: #{tpu_custom_call.1} parent=1 // pred_check
      _
    $region15: #{tpu_custom_call.1} parent=1 // pred_check_branch
      %43 = sbr.rel (0) target = $region17
    $region16: #{tpu_custom_call.1} parent=1 // pred_region
      %s45 = ssub.s32 1024, 1024
      %46 = vsyncadd [#allocation6], %s45
      %s47 = sshll.u32 [#allocation7], 4
      %s48 = int_to_ptr.vmem [resolvable:$true] %s47
      %53 = dma.hbm_to_vmem [thread:$0]  %s3, 1024, %s48, [#allocation6], 64, 64, 4
    $region17: #{tpu_custom_call.1} parent=1 // pred_fallthru
      _
    // Predicated region
    $region18: #{tpu_custom_call.1} parent=1 // pred_check
      _
    $region19: #{tpu_custom_call.1} parent=1 // pred_check_branch
      %55 = sbr.rel (0) target = $region21
    $region20: #{tpu_custom_call.1} parent=1 // pred_region
      _
    $region21: #{tpu_custom_call.1} parent=1 // pred_fallthru
      _
    // Predicated region
    $region22: #{tpu_custom_call.1} parent=1 // pred_check
      _
    $region23: #{tpu_custom_call.1} parent=1 // pred_check_branch
      %57 = sbr.rel (0) target = $region25
    $region24: #{tpu_custom_call.1} parent=1 // pred_region
      %s59 = ssub.s32 1024, 1024
      %60 = vsyncadd [#allocation9], %s59
      %s61 = sshll.u32 [#allocation8], 4
      %s62 = int_to_ptr.vmem [resolvable:$true] %s61
      %67 = dma.hbm_to_vmem [thread:$0]  %s5, 1024, %s62, [#allocation9], 64, 64, 4
    $region25: #{tpu_custom_call.1} parent=1 // pred_fallthru
      _
    // Predicated region
    $region26: #{tpu_custom_call.1} parent=1 // pred_check
      _
    $region27: #{tpu_custom_call.1} parent=1 // pred_check_branch
      %69 = sbr.rel (0) target = $region29
    $region28: #{tpu_custom_call.1} parent=1 // pred_region
      _
    $region29: #{tpu_custom_call.1} parent=1 // pred_fallthru
      _
    // Predicated region
    $region30: #{tpu_custom_call.1} parent=1 // pred_check
      _
    $region31: #{tpu_custom_call.1} parent=1 // pred_check_branch
      %71 = sbr.rel (0) target = $region33
    $region32: #{tpu_custom_call.1} parent=1 // pred_region
      %72 = dma.done [#allocation3], 128
    $region33: #{tpu_custom_call.1} parent=1 // pred_fallthru
      _
    // Predicated region
    $region34: #{tpu_custom_call.1} parent=1 // pred_check
      _
    $region35: #{tpu_custom_call.1} parent=1 // pred_check_branch
      %74 = sbr.rel (0) target = $region37
    $region36: #{tpu_custom_call.1} parent=1 // pred_region
      %75 = dma.done [#allocation6], 256
    $region37: #{tpu_custom_call.1} parent=1 // pred_fallthru
      _
    // Predicated region
    $region38: #{tpu_custom_call.1} parent=1 // pred_check
      _
    $region39: #{tpu_custom_call.1} parent=1 // pred_check_branch
      %77 = sbr.rel (0) target = $region41
    $region40: #{tpu_custom_call.1} parent=1 // pred_region
      %78 = dma.done [#allocation6], 1024
    $region41: #{tpu_custom_call.1} parent=1 // pred_fallthru
      _
    // Predicated region
    $region42: #{tpu_custom_call.1} parent=1 // pred_check
      _
    $region43: #{tpu_custom_call.1} parent=1 // pred_check_branch
      %80 = sbr.rel (0) target = $region45
    $region44: #{tpu_custom_call.1} parent=1 // pred_region
      %81 = dma.done [#allocation9], 1024
    $region45: #{tpu_custom_call.1} parent=1 // pred_fallthru
      _
    %v83 = vld [vmem:[#allocation2] sm:$0xf]
    %v84 = vld [vmem:[#allocation2 + $0x4] sm:$0xf]
    %v85 = vld [vmem:[#allocation5] sm:$0xf]
    %v86 = vld [vmem:[#allocation5 + $0x4] sm:$0xf]
    %v87 = vld [vmem:[#allocation5 + $0x8] sm:$0xf]
    %v88 = vld [vmem:[#allocation5 + $0xc] sm:$0xf]
    %v89 = vld [vmem:[%s2] sm:$0x1]
    %v91 = vlaneseq
    %v92 = vshrl.u32 %v91, 7
    %v93 = vsub.s32 0, %v92
    %v94 = vrot.slane %v89, %v93
    %v98 = vunpack.c.l.b16 %v83
    %v99 = vunpack.c.l.b16 %v84
    %v100 = vpack.c.b16 %v99, %v98
    %v105 = vunpack.c.l.b16 %v85
    %v106 = vunpack.c.l.b16 %v86
    %v107 = vunpack.c.l.b16 %v87
    %v108 = vunpack.c.l.b16 %v88
    %v109 = vpack.c.b16 %v106, %v105
    %v110 = vpack.c.b16 %v108, %v107
    %vm113 = vcmask 261120
    %v115 = vsel %vm113, %v100, 0
    %117 = vmatprep.subr.bf16.mxu0 0
    %118 = vmatpush1.bf16.msra.mxu0 %v109
    %119 = vmatprep.subr.bf16.mxu0 0
    %120 = vmatpush1.bf16.msra.mxu0 %v110
    %121 = vmatprep.subr.bf16.mxu0 0
    %122 = vmatpush1.bf16.msra.mxu0 0
    %123 = vmatprep.subr.bf16.mxu0 0
    %124 = vmatpush1.bf16.msra.mxu0 0
    %125 = vmatprep.subr.bf16.mxu0 0
    %126 = vmatpush1.bf16.msra.mxu0 0
    %127 = vmatprep.subr.bf16.mxu0 0
    %128 = vmatpush1.bf16.msra.mxu0 0
    %129 = vmatprep.subr.bf16.mxu0 0
    %130 = vmatpush1.bf16.msra.mxu0 0
    %131 = vmatprep.subr.bf16.mxu0 0
    %132 = vmatpush1.bf16.msra.mxu0 0
    %133 = vmatprep.subr.bf16.mxu0 0
    %134 = vmatpush1.bf16.msra.mxu0 0
    %135 = vmatprep.subr.bf16.mxu0 0
    %136 = vmatpush1.bf16.msra.mxu0 0
    %137 = vmatprep.subr.bf16.mxu0 0
    %138 = vmatpush1.bf16.msra.mxu0 0
    %139 = vmatprep.subr.bf16.mxu0 0
    %140 = vmatpush1.bf16.msra.mxu0 0
    %141 = vmatprep.subr.bf16.mxu0 0
    %142 = vmatpush1.bf16.msra.mxu0 0
    %143 = vmatprep.subr.bf16.mxu0 0
    %144 = vmatpush1.bf16.msra.mxu0 0
    %145 = vmatprep.subr.bf16.mxu0 0
    %146 = vmatpush1.bf16.msra.mxu0 0
    %147 = vmatprep.subr.bf16.mxu0 0
    %148 = vmatpush1.bf16.msra.mxu0 0
    %149 = vmatprep.mubr.bf16.mxu0 0
    %150 = vmatmul.mubr.bf16.gmra.mrb[0].mxu0 %v115
    %v151 = vpop.f32.mrb[0].mxu0
    %v152 = vadd.f32 %v94, %v151
    %v153 = vpop.f32.mrb[0].mxu0
    %v154 = vpop.f32.mrb[0].mxu0
    %v155 = vadd.f32 %v94, %v154
    %v156 = vpop.f32.mrb[0].mxu0
    %157 = vdwg.mxu0
    %vm158 = vcmp.gt.f32.partialorder %v152, 0.0
    %vm159 = vcmp.gt.f32.partialorder %v155, 0.0
    %v160 = vmul.f32 %v152, 0.01
    %v161 = vmul.f32 %v155, 0.01
    %v162 = vsel %vm158, %v152, %v160
    %v163 = vsel %vm159, %v155, %v161
    %v164 = vpack.c.bf16 %v163, %v162
    %v165 = vld [vmem:[#allocation7] sm:$0xf]
    %v166 = vld [vmem:[#allocation7 + $0x4] sm:$0xf]
    %v167 = vld [vmem:[#allocation7 + $0x8] sm:$0xf]
    %v168 = vld [vmem:[#allocation7 + $0xc] sm:$0xf]
    %v169 = vld [vmem:[#allocation7 + $0x10] sm:$0xf]
    %v170 = vld [vmem:[#allocation7 + $0x14] sm:$0xf]
    %v171 = vld [vmem:[#allocation7 + $0x18] sm:$0xf]
    %v172 = vld [vmem:[#allocation7 + $0x1c] sm:$0xf]
    %v173 = vld [vmem:[#allocation7 + $0x20] sm:$0xf]
    %v174 = vld [vmem:[#allocation7 + $0x24] sm:$0xf]
    %v175 = vld [vmem:[#allocation7 + $0x28] sm:$0xf]
    %v176 = vld [vmem:[#allocation7 + $0x2c] sm:$0xf]
    %v177 = vld [vmem:[#allocation7 + $0x30] sm:$0xf]
    %v178 = vld [vmem:[#allocation7 + $0x34] sm:$0xf]
    %v179 = vld [vmem:[#allocation7 + $0x38] sm:$0xf]
    %v180 = vld [vmem:[#allocation7 + $0x3c] sm:$0xf]
    %v181 = vld [vmem:[%s4] sm:$0x1]
    %v183 = vlaneseq
    %v184 = vshrl.u32 %v183, 7
    %v185 = vsub.s32 0, %v184
    %v186 = vrot.slane %v181, %v185
    %v204 = vunpack.c.l.b16 %v165
    %v205 = vunpack.c.l.b16 %v166
    %v206 = vunpack.c.l.b16 %v167
    %v207 = vunpack.c.l.b16 %v168
    %v208 = vunpack.c.l.b16 %v169
    %v209 = vunpack.c.l.b16 %v170
    %v210 = vunpack.c.l.b16 %v171
    %v211 = vunpack.c.l.b16 %v172
    %v212 = vunpack.c.l.b16 %v173
    %v213 = vunpack.c.l.b16 %v174
    %v214 = vunpack.c.l.b16 %v175
    %v215 = vunpack.c.l.b16 %v176
    %v216 = vunpack.c.l.b16 %v177
    %v217 = vunpack.c.l.b16 %v178
    %v218 = vunpack.c.l.b16 %v179
    %v219 = vunpack.c.l.b16 %v180
    %v220 = vpack.c.b16 %v205, %v204
    %v221 = vpack.c.b16 %v207, %v206
    %v222 = vpack.c.b16 %v209, %v208
    %v223 = vpack.c.b16 %v211, %v210
    %v224 = vpack.c.b16 %v213, %v212
    %v225 = vpack.c.b16 %v215, %v214
    %v226 = vpack.c.b16 %v217, %v216
    %v227 = vpack.c.b16 %v219, %v218
    %236 = vmatprep.subr.bf16.mxu0 0
    %237 = vmatpush1.bf16.msra.mxu0 %v220
    %238 = vmatprep.subr.bf16.mxu0 0
    %239 = vmatpush1.bf16.msra.mxu0 %v221
    %240 = vmatprep.subr.bf16.mxu0 0
    %241 = vmatpush1.bf16.msra.mxu0 %v222
    %242 = vmatprep.subr.bf16.mxu0 0
    %243 = vmatpush1.bf16.msra.mxu0 %v223
    %244 = vmatprep.subr.bf16.mxu0 0
    %245 = vmatpush1.bf16.msra.mxu0 %v224
    %246 = vmatprep.subr.bf16.mxu0 0
    %247 = vmatpush1.bf16.msra.mxu0 %v225
    %248 = vmatprep.subr.bf16.mxu0 0
    %249 = vmatpush1.bf16.msra.mxu0 %v226
    %250 = vmatprep.subr.bf16.mxu0 0
    %251 = vmatpush1.bf16.msra.mxu0 %v227
    %252 = vmatprep.subr.bf16.mxu0 0
    %253 = vmatpush1.bf16.msra.mxu0 0
    %254 = vmatprep.subr.bf16.mxu0 0
    %255 = vmatpush1.bf16.msra.mxu0 0
    %256 = vmatprep.subr.bf16.mxu0 0
    %257 = vmatpush1.bf16.msra.mxu0 0
    %258 = vmatprep.subr.bf16.mxu0 0
    %259 = vmatpush1.bf16.msra.mxu0 0
    %260 = vmatprep.subr.bf16.mxu0 0
    %261 = vmatpush1.bf16.msra.mxu0 0
    %262 = vmatprep.subr.bf16.mxu0 0
    %263 = vmatpush1.bf16.msra.mxu0 0
    %264 = vmatprep.subr.bf16.mxu0 0
    %265 = vmatpush1.bf16.msra.mxu0 0
    %266 = vmatprep.subr.bf16.mxu0 0
    %267 = vmatpush1.bf16.msra.mxu0 0
    %268 = vmatprep.mubr.bf16.mxu0 0
    %269 = vmatmul.mubr.bf16.gmra.mrb[0].mxu0 %v164
    %v270 = vpop.f32.mrb[0].mxu0
    %v271 = vadd.f32 %v186, %v270
    %v272 = vpop.f32.mrb[0].mxu0
    %v273 = vpop.f32.mrb[0].mxu0
    %v274 = vadd.f32 %v186, %v273
    %v275 = vpop.f32.mrb[0].mxu0
    %276 = vdwg.mxu0
    %vm277 = vcmp.gt.f32.partialorder %v271, 0.0
    %vm278 = vcmp.gt.f32.partialorder %v274, 0.0
    %v279 = vmul.f32 %v271, 0.01
    %v280 = vmul.f32 %v274, 0.01
    %v281 = vsel %vm277, %v271, %v279
    %v282 = vsel %vm278, %v274, %v280
    %v283 = vpack.c.bf16 %v282, %v281
    %v284 = vld [vmem:[#allocation8] sm:$0xf]
    %v285 = vld [vmem:[#allocation8 + $0x4] sm:$0xf]
    %v286 = vld [vmem:[#allocation8 + $0x8] sm:$0xf]
    %v287 = vld [vmem:[#allocation8 + $0xc] sm:$0xf]
    %v288 = vld [vmem:[#allocation8 + $0x10] sm:$0xf]
    %v289 = vld [vmem:[#allocation8 + $0x14] sm:$0xf]
    %v290 = vld [vmem:[#allocation8 + $0x18] sm:$0xf]
    %v291 = vld [vmem:[#allocation8 + $0x1c] sm:$0xf]
    %v292 = vld [vmem:[#allocation8 + $0x20] sm:$0xf]
    %v293 = vld [vmem:[#allocation8 + $0x24] sm:$0xf]
    %v294 = vld [vmem:[#allocation8 + $0x28] sm:$0xf]
    %v295 = vld [vmem:[#allocation8 + $0x2c] sm:$0xf]
    %v296 = vld [vmem:[#allocation8 + $0x30] sm:$0xf]
    %v297 = vld [vmem:[#allocation8 + $0x34] sm:$0xf]
    %v298 = vld [vmem:[#allocation8 + $0x38] sm:$0xf]
    %v299 = vld [vmem:[#allocation8 + $0x3c] sm:$0xf]
    %v300 = vld [vmem:[%s6] sm:$0x1]
    %v302 = vlaneseq
    %v303 = vshrl.u32 %v302, 7
    %v304 = vsub.s32 0, %v303
    %v305 = vrot.slane %v300, %v304
    %v323 = vunpack.c.l.b16 %v284
    %v324 = vunpack.c.l.b16 %v285
    %v325 = vunpack.c.l.b16 %v286
    %v326 = vunpack.c.l.b16 %v287
    %v327 = vunpack.c.l.b16 %v288
    %v328 = vunpack.c.l.b16 %v289
    %v329 = vunpack.c.l.b16 %v290
    %v330 = vunpack.c.l.b16 %v291
    %v331 = vunpack.c.l.b16 %v292
    %v332 = vunpack.c.l.b16 %v293
    %v333 = vunpack.c.l.b16 %v294
    %v334 = vunpack.c.l.b16 %v295
    %v335 = vunpack.c.l.b16 %v296
    %v336 = vunpack.c.l.b16 %v297
    %v337 = vunpack.c.l.b16 %v298
    %v338 = vunpack.c.l.b16 %v299
    %v339 = vpack.c.b16 %v324, %v323
    %v340 = vpack.c.b16 %v326, %v325
    %v341 = vpack.c.b16 %v328, %v327
    %v342 = vpack.c.b16 %v330, %v329
    %v343 = vpack.c.b16 %v332, %v331
    %v344 = vpack.c.b16 %v334, %v333
    %v345 = vpack.c.b16 %v336, %v335
    %v346 = vpack.c.b16 %v338, %v337
    %355 = vmatprep.subr.bf16.mxu0 0
    %356 = vmatpush1.bf16.msra.mxu0 %v339
    %357 = vmatprep.subr.bf16.mxu0 0
    %358 = vmatpush1.bf16.msra.mxu0 %v340
    %359 = vmatprep.subr.bf16.mxu0 0
    %360 = vmatpush1.bf16.msra.mxu0 %v341
    %361 = vmatprep.subr.bf16.mxu0 0
    %362 = vmatpush1.bf16.msra.mxu0 %v342
    %363 = vmatprep.subr.bf16.mxu0 0
    %364 = vmatpush1.bf16.msra.mxu0 %v343
    %365 = vmatprep.subr.bf16.mxu0 0
    %366 = vmatpush1.bf16.msra.mxu0 %v344
    %367 = vmatprep.subr.bf16.mxu0 0
    %368 = vmatpush1.bf16.msra.mxu0 %v345
    %369 = vmatprep.subr.bf16.mxu0 0
    %370 = vmatpush1.bf16.msra.mxu0 %v346
    %371 = vmatprep.subr.bf16.mxu0 0
    %372 = vmatpush1.bf16.msra.mxu0 0
    %373 = vmatprep.subr.bf16.mxu0 0
    %374 = vmatpush1.bf16.msra.mxu0 0
    %375 = vmatprep.subr.bf16.mxu0 0
    %376 = vmatpush1.bf16.msra.mxu0 0
    %377 = vmatprep.subr.bf16.mxu0 0
    %378 = vmatpush1.bf16.msra.mxu0 0
    %379 = vmatprep.subr.bf16.mxu0 0
    %380 = vmatpush1.bf16.msra.mxu0 0
    %381 = vmatprep.subr.bf16.mxu0 0
    %382 = vmatpush1.bf16.msra.mxu0 0
    %383 = vmatprep.subr.bf16.mxu0 0
    %384 = vmatpush1.bf16.msra.mxu0 0
    %385 = vmatprep.subr.bf16.mxu0 0
    %386 = vmatpush1.bf16.msra.mxu0 0
    %387 = vmatprep.mubr.bf16.mxu0 0
    %388 = vmatmul.mubr.bf16.gmra.mrb[0].mxu0 %v283
    %v389 = vpop.f32.mrb[0].mxu0
    %v390 = vadd.f32 %v305, %v389
    %v391 = vpop.f32.mrb[0].mxu0
    %v392 = vpop.f32.mrb[0].mxu0
    %v393 = vadd.f32 %v305, %v392
    %v394 = vpop.f32.mrb[0].mxu0
    %395 = vdwg.mxu0
    %v396 = vpack.c.bf16 %v393, %v390
    %v398 = vunpack.c.l.b16 %v396
    %v399 = vunpack.c.h.b16 %v396
    %v400 = vpack.c.b16 %v398, %v398
    %v401 = vpack.c.b16 %v399, %v399
    %404 = vst [vmem:[#allocation10] sm:$0xf] %v400
    %405 = vst [vmem:[#allocation10 + $0x4] sm:$0xf] %v401
    // Predicated region
    $region46: #{tpu_custom_call.1} parent=1 // pred_check
      _
    $region47: #{tpu_custom_call.1} parent=1 // pred_check_branch
      %407 = sbr.rel (0) target = $region49
    $region48: #{tpu_custom_call.1} parent=1 // pred_region
      %s409 = ssub.s32 128, 128
      %410 = vsyncadd [#allocation4], %s409
      %s411 = sshll.u32 [#allocation10], 4
      %s412 = int_to_ptr.vmem [resolvable:$true] %s411
      %417 = dma.vmem_to_hbm [thread:$0]  %s412, 128, %s7, [#allocation4], 64, 64, 4
    $region49: #{tpu_custom_call.1} parent=1 // pred_fallthru
      _
    // Predicated region
    $region50: #{tpu_custom_call.1} parent=1 // pred_check
      _
    $region51: #{tpu_custom_call.1} parent=1 // pred_check_branch
      %419 = sbr.rel (0) target = $region53
    $region52: #{tpu_custom_call.1} parent=1 // pred_region
      %420 = dma.done [#allocation4], 128
    $region53: #{tpu_custom_call.1} parent=1 // pred_fallthru
      _
    %421 = vsyncpa [#allocation3], 1
    %422 = vsyncpa [#allocation6], 1
    %423 = vsyncpa [#allocation9], 1
    %424 = vsyncpa [#allocation4], 1

</llo_original>
